<compile_context>
chip_gen: v7x
topology: tpu7x:2x2x1
jax: 0.10.0
libtpu: 0.0.40
codegen_flags: <defaults>
</compile_context>

<pallas_src>
import math
import functools

import jax
import jax.numpy as jnp
from jax import lax
from jax.experimental import pallas as pl
from jax.experimental.pallas import tpu as pltpu


def _ema_quantize_kernel(z_ref, cbt_ref, cb_ref, e2_ref,
                         zq_ref, idx_ref, counts_ref, sqerr_ref,
                         *, n_valid, tile_n, num_codes, needs_mask,
                         cross_in_bf16):
    z = z_ref[...]                                                    # (TN, D) f32

    # Row-validity mask — only materialized when N was padded to a tile multiple.
    if needs_mask:
        row0 = pl.program_id(0) * tile_n
        rid_row = row0 + lax.broadcasted_iota(jnp.int32, (1, tile_n), 1)
        ones_row = (rid_row < n_valid).astype(jnp.float32)            # (1, TN)
        rid_col = row0 + lax.broadcasted_iota(jnp.int32, (tile_n, 1), 0)
        valid_col = (rid_col < n_valid).astype(jnp.float32)           # (TN, 1)
    else:
        ones_row = jnp.ones((1, tile_n), jnp.float32)
        valid_col = None

    # Distance for argmin: ||e||^2 - 2 z.e   (per-row ||z||^2 is argmin-invariant
    # and dropped; the -2 is folded into z, a (TN,D) multiply instead of (TN,K)).
    zm2 = -2.0 * z
    if cross_in_bf16:
        # Optional bf16 MXU path (v6e/v7x ~2x matmul throughput). Gated off by
        # default: near-tied codebook entries can flip argmin vs exact f32.
        cross = jnp.dot(zm2.astype(jnp.bfloat16),
                        cbt_ref[...].astype(jnp.bfloat16),
                        preferred_element_type=jnp.float32)           # (TN, K)
    else:
        cross = jnp.dot(zm2, cbt_ref[...],
                        preferred_element_type=jnp.float32)           # (TN, K)
    dist = cross + e2_ref[...]                                        # (TN, K)

    # Nearest codebook entry (lane-axis argmin), written lane-native as (TN,1).
    idx = jnp.argmin(dist, axis=1).astype(jnp.int32)                  # (TN,)
    idx_ref[...] = idx[:, None]

    # Exact gather of codebook rows via one-hot matmul on the MXU.
    iota_k = lax.broadcasted_iota(jnp.int32, (tile_n, num_codes), 1)
    enc = (idx[:, None] == iota_k).astype(jnp.float32)                # (TN, K)
    z_q = jnp.dot(enc, cb_ref[...], preferred_element_type=jnp.float32)
    zq_ref[...] = z_q.astype(zq_ref.dtype)                            # (TN, D)

    # Per-tile code counts via an MXU row-vector matmul (no XLU sublane reduce).
    # Written into sublane 0 of an (8, K) block; the wrapper sums the array.
    counts_row = jnp.dot(ones_row, enc, preferred_element_type=jnp.float32)
    sub_iota = lax.broadcasted_iota(jnp.int32, (8, num_codes), 0)
    counts_ref[...] = jnp.where(sub_iota == 0, counts_row, 0.0)

    # Per-row squared error ||z_q - z||^2; wrapper finishes mean + scaling.
    diff = z_q - z
    sq = jnp.sum(diff * diff, axis=1, keepdims=True)                  # (TN, 1)
    if needs_mask:
        sq = sq * valid_col
    sqerr_ref[...] = sq


def _pick_tile_n(n, k, d, vmem_budget_bytes=24 * 1024 * 1024):
    """Largest TN (multiple of 8, capped) whose per-tile VMEM fits the budget.

    Dominant per-tile cost: ~3 live f32 (TN, K) temporaries (dist / one-hot /
    iota) plus double-buffered z and z_q tiles at (TN, max(D, 128)) lanes.
    Budgeted conservatively so it also fits v7x's 64 MiB physical VMEM.
    """
    d_lanes = max(d, 128)           # lanes are padded to 128 regardless of D
    per_row = 3 * 4 * k + 4 * 4 * d_lanes
    tn = max(8, (vmem_budget_bytes // per_row) // 8 * 8)
    tn = min(tn, 1024)
    n_pad8 = ((n + 7) // 8) * 8
    return min(tn, n_pad8)


def ema_quantize_forward(z_nchw, codebook, commitment_cost=0.25,
                         cross_in_bf16=False):
    """z_nchw: (B, C, H, W) float32, codebook: (K, C) float32."""
    B, C, H, W = z_nchw.shape
    K, D = codebook.shape
    assert D == C
    N = B * H * W

    # glue: NCHW -> NHWC -> (N, C); hoist codebook transpose + ||e||^2 out of
    # the kernel (one-time, tiny) so no per-tile XLU transpose / K*D reduce.
    z_flat = jnp.transpose(z_nchw, (0, 2, 3, 1)).reshape(N, C).astype(jnp.float32)
    cb = codebook.astype(jnp.float32)                  # (K, D), for the gather
    cb_t = cb.T                                        # (D, K), for the cross matmul
    e2 = jnp.sum(cb * cb, axis=1)[None, :]             # (1, K)

    tile_n = _pick_tile_n(N, K, D)
    num_tiles = -(-N // tile_n)
    n_pad = num_tiles * tile_n
    needs_mask = (n_pad != N)
    if needs_mask:
        z_flat = jnp.pad(z_flat, ((0, n_pad - N), (0, 0)))

    kernel = functools.partial(
        _ema_quantize_kernel,
        n_valid=N, tile_n=tile_n, num_codes=K,
        needs_mask=needs_mask, cross_in_bf16=cross_in_bf16)

    out_shapes = (
        jax.ShapeDtypeStruct((n_pad, D), jnp.float32),          # z_q (flat)
        jax.ShapeDtypeStruct((n_pad, 1), jnp.int32),            # indices
        jax.ShapeDtypeStruct((num_tiles * 8, K), jnp.float32),  # per-tile counts
        jax.ShapeDtypeStruct((n_pad, 1), jnp.float32),          # per-row sq err
    )

    grid_spec = pltpu.PrefetchScalarGridSpec(
        num_scalar_prefetch=0,
        grid=(num_tiles,),
        in_specs=[
            pl.BlockSpec((tile_n, D), lambda i: (i, 0)),   # z tile (streamed)
            pl.BlockSpec((D, K), lambda i: (0, 0)),        # cb^T  (resident)
            pl.BlockSpec((K, D), lambda i: (0, 0)),        # cb    (resident)
            pl.BlockSpec((1, K), lambda i: (0, 0)),        # ||e||^2 (resident)
        ],
        out_specs=[
            pl.BlockSpec((tile_n, D), lambda i: (i, 0)),
            pl.BlockSpec((tile_n, 1), lambda i: (i, 0)),
            pl.BlockSpec((8, K), lambda i: (i, 0)),
            pl.BlockSpec((tile_n, 1), lambda i: (i, 0)),
        ],
    )

    cost = pl.CostEstimate(
        flops=int(4 * N * K * D + 2 * N * K),
        transcendentals=0,
        bytes_accessed=int(4 * (2 * n_pad * D + 2 * K * D + K
                                + 2 * n_pad + num_tiles * 8 * K)),
    )

    zq_flat, idx_col, counts_partial, sqerr = pl.pallas_call(
        kernel,
        out_shape=out_shapes,
        grid_spec=grid_spec,
        compiler_params=pltpu.CompilerParams(
            dimension_semantics=("parallel",),          # no cross-tile carry
            vmem_limit_bytes=48 * 1024 * 1024),
        cost_estimate=cost,
    )(z_flat, cb_t, cb, e2)

    # Tiny wrapper-side reductions (per-tile partials -> scalars).
    counts = jnp.sum(counts_partial, axis=0)                        # (K,)
    avg_use = counts / jnp.float32(N)
    perplexity = jnp.exp(-jnp.sum(avg_use * jnp.log(avg_use + 1e-10)))
    loss = (jnp.float32(commitment_cost)
            * jnp.sum(sqerr[:N, 0]) / jnp.float32(N * D))

    # glue back to PyTorch output conventions (straight-through value == z_q).
    z_q = jnp.transpose(zq_flat[:N].reshape(B, H, W, C), (0, 3, 1, 2))
    min_encoding_indices = idx_col[:N, 0].reshape(B, H, W)
    return z_q, loss, (min_encoding_indices, perplexity)


def init_codebook(num_codes, code_dim, key):
    # EmbeddingEMA init: uniform(-sqrt(3/num_tokens), sqrt(3/num_tokens))
    bound = math.sqrt(3.0 / num_codes)
    return jax.random.uniform(key, (num_codes, code_dim),
                              dtype=jnp.float32, minval=-bound, maxval=bound)


if __name__ == "__main__":
    # small shapes: batch=2, code_dim=32, spatial=8x8, num_codes=128
    B, C, H, W = 2, 32, 8, 8
    num_codes = 128

    key = jax.random.PRNGKey(0)
    k_z, k_cb = jax.random.split(key)
    z = jax.random.normal(k_z, (B, C, H, W), dtype=jnp.float32)
    codebook = init_codebook(num_codes, C, k_cb)

    fwd = jax.jit(ema_quantize_forward)
    z_q, loss, (indices, perplexity) = fwd(z, codebook)
    jax.block_until_ready((z_q, loss, indices, perplexity))

    # sanity checks against a pure-JAX reference of the PyTorch forward
    z_nhwc = jnp.transpose(z, (0, 2, 3, 1)).reshape(-1, C)
    dist_ref = (jnp.sum(z_nhwc ** 2, 1, keepdims=True)
                + jnp.sum(codebook ** 2, 1)[None, :]
                - 2.0 * z_nhwc @ codebook.T)
    idx_ref = jnp.argmin(dist_ref, axis=1)
    zq_ref = codebook[idx_ref].reshape(B, H, W, C).transpose(0, 3, 1, 2)
    assert jnp.allclose(z_q, zq_ref, atol=1e-5), "z_q mismatch"
    assert jnp.array_equal(indices.reshape(-1).astype(idx_ref.dtype),
                           idx_ref), "indices mismatch"
    loss_ref = 0.25 * jnp.mean((zq_ref - z) ** 2)
    assert jnp.allclose(loss, loss_ref, atol=1e-5), "loss mismatch"
    counts_ref = jnp.sum(jax.nn.one_hot(idx_ref, num_codes), axis=0)
    avg_ref = counts_ref / z_nhwc.shape[0]
    perp_ref = jnp.exp(-jnp.sum(avg_ref * jnp.log(avg_ref + 1e-10)))
    assert jnp.allclose(perplexity, perp_ref, atol=1e-3), "perplexity mismatch"

    print("KERNEL_OK")
</pallas_src>

<mosaic_0001>
module attributes {stable_mosaic.version = 11 : i64} {
  func.func @_ema_quantize_kernel(%arg0: i32, %arg1: memref<128x32xf32, #tpu.memory_space<vmem>>, %arg2: memref<32x128xf32, #tpu.memory_space<vmem>>, %arg3: memref<128x32xf32, #tpu.memory_space<vmem>>, %arg4: memref<1x128xf32, #tpu.memory_space<vmem>>, %arg5: memref<128x32xf32, #tpu.memory_space<vmem>>, %arg6: memref<128x1xi32, #tpu.memory_space<vmem>>, %arg7: memref<8x128xf32, #tpu.memory_space<vmem>>, %arg8: memref<128x1xf32, #tpu.memory_space<vmem>>) attributes {dimension_semantics = [#tpu.dimension_semantics<parallel>], iteration_bounds = array<i64: 1>, scalar_prefetch = 0 : i64, scratch_operands = 0 : i64, tpu.core_type = #tpu.core_type<tc>, window_params = [{transform_indices = @transform_0, window_bounds = array<i64: 128, 32>}, {pipeline_mode = #tpu.pipeline_mode<synchronous>, transform_indices = @transform_1, window_bounds = array<i64: 32, 128>}, {pipeline_mode = #tpu.pipeline_mode<synchronous>, transform_indices = @transform_2, window_bounds = array<i64: 128, 32>}, {pipeline_mode = #tpu.pipeline_mode<synchronous>, transform_indices = @transform_3, window_bounds = array<i64: 1, 128>}, {transform_indices = @transform_4, window_bounds = array<i64: 128, 32>}, {transform_indices = @transform_5, window_bounds = array<i64: 128, 1>}, {transform_indices = @transform_6, window_bounds = array<i64: 8, 128>}, {transform_indices = @transform_7, window_bounds = array<i64: 128, 1>}]} {
    %c0 = arith.constant 0 : index
    %c0_0 = arith.constant 0 : index
    %0 = vector.load %arg1[%c0, %c0_0] : memref<128x32xf32, #tpu.memory_space<vmem>>, vector<128x32xf32>
    %cst = arith.constant 1.000000e+00 : f32
    %1 = vector.broadcast %cst : f32 to vector<1x128xf32>
    %cst_1 = arith.constant -2.000000e+00 : f32
    %2 = vector.broadcast %cst_1 : f32 to vector<128x32xf32>
    %3 = arith.mulf %2, %0 : vector<128x32xf32>
    %c0_2 = arith.constant 0 : index
    %c0_3 = arith.constant 0 : index
    %4 = vector.load %arg2[%c0_2, %c0_3] : memref<32x128xf32, #tpu.memory_space<vmem>>, vector<32x128xf32>
    %cst_4 = arith.constant dense<0.000000e+00> : vector<128x128xf32>
    %5 = tpu.matmul %3, %4, %cst_4 {dimension_numbers = #tpu.dot_dimension_numbers<[1], [0], [0], [1], [0, 0, 1, 1], [], []>} : vector<128x32xf32>, vector<32x128xf32>, vector<128x128xf32> -> vector<128x128xf32>
    %c0_5 = arith.constant 0 : index
    %c0_6 = arith.constant 0 : index
    %6 = vector.load %arg4[%c0_5, %c0_6] : memref<1x128xf32, #tpu.memory_space<vmem>>, vector<1x128xf32>
    %7 = vector.broadcast %6 : vector<1x128xf32> to vector<128x128xf32>
    %8 = arith.addf %5, %7 : vector<128x128xf32>
    %9 = tpu.reduce_index %8 {axis = 1 : i32, kind = #tpu.reduction_kind<arg_min>} : vector<128x128xf32> -> vector<128xi32>
    %10 = vector.shape_cast %9 : vector<128xi32> to vector<128x1xi32>
    %c0_7 = arith.constant 0 : index
    %c0_8 = arith.constant 0 : index
    %11 = vector.load %arg6[%c0_7, %c0_8] : memref<128x1xi32, #tpu.memory_space<vmem>>, vector<128x1xi32>
    tpu.vector_store %arg6[%c0_7, %c0_8], %10 {strides = array<i32>} : memref<128x1xi32, #tpu.memory_space<vmem>>, vector<128x1xi32>,
    %12 = tpu.iota {dimensions = array<i32: 1>} : vector<128x128xi32>
    %13 = vector.shape_cast %9 : vector<128xi32> to vector<128x1xi32>
    %14 = vector.broadcast %13 : vector<128x1xi32> to vector<128x128xi32>
    %15 = arith.cmpi eq, %14, %12 : vector<128x128xi32>
    %16 = arith.extui %15 : vector<128x128xi1> to vector<128x128xi32>
    %17 = arith.sitofp %16 : vector<128x128xi32> to vector<128x128xf32>
    %c0_9 = arith.constant 0 : index
    %c0_10 = arith.constant 0 : index
    %18 = vector.load %arg3[%c0_9, %c0_10] : memref<128x32xf32, #tpu.memory_space<vmem>>, vector<128x32xf32>
    %cst_11 = arith.constant dense<0.000000e+00> : vector<128x32xf32>
    %19 = tpu.matmul %17, %18, %cst_11 {dimension_numbers = #tpu.dot_dimension_numbers<[1], [0], [0], [1], [0, 0, 1, 1], [], []>} : vector<128x128xf32>, vector<128x32xf32>, vector<128x32xf32> -> vector<128x32xf32>
    %c0_12 = arith.constant 0 : index
    %c0_13 = arith.constant 0 : index
    %20 = vector.load %arg5[%c0_12, %c0_13] : memref<128x32xf32, #tpu.memory_space<vmem>>, vector<128x32xf32>
    tpu.vector_store %arg5[%c0_12, %c0_13], %19 {strides = array<i32>} : memref<128x32xf32, #tpu.memory_space<vmem>>, vector<128x32xf32>,
    %cst_14 = arith.constant dense<0.000000e+00> : vector<1x128xf32>
    %21 = tpu.matmul %1, %17, %cst_14 {dimension_numbers = #tpu.dot_dimension_numbers<[1], [0], [0], [1], [0, 0, 1, 1], [], []>} : vector<1x128xf32>, vector<128x128xf32>, vector<1x128xf32> -> vector<1x128xf32>
    %22 = tpu.iota {dimensions = array<i32: 0>} : vector<8x128xi32>
    %c0_i32 = arith.constant 0 : i32
    %23 = vector.broadcast %c0_i32 : i32 to vector<8x128xi32>
    %24 = arith.cmpi eq, %22, %23 : vector<8x128xi32>
    %cst_15 = arith.constant 0.000000e+00 : f32
    %25 = vector.shape_cast %21 : vector<1x128xf32> to vector<1x128xf32>
    %26 = vector.broadcast %25 : vector<1x128xf32> to vector<8x128xf32>
    %27 = vector.broadcast %cst_15 : f32 to vector<8x128xf32>
    %28 = arith.select %24, %26, %27 : vector<8x128xi1>, vector<8x128xf32>
    %c0_16 = arith.constant 0 : index
    %c0_17 = arith.constant 0 : index
    %29 = vector.load %arg7[%c0_16, %c0_17] : memref<8x128xf32, #tpu.memory_space<vmem>>, vector<8x128xf32>
    tpu.vector_store %arg7[%c0_16, %c0_17], %28 {strides = array<i32>} : memref<8x128xf32, #tpu.memory_space<vmem>>, vector<8x128xf32>,
    %30 = arith.subf %19, %0 : vector<128x32xf32>
    %31 = arith.mulf %30, %30 : vector<128x32xf32>
    %cst_18 = arith.constant dense<0.000000e+00> : vector<128xf32>
    %32 = vector.multi_reduction <add>, %31, %cst_18 [1] : vector<128x32xf32> to vector<128xf32>
    %33 = vector.shape_cast %32 : vector<128xf32> to vector<128x1xf32>
    %c0_19 = arith.constant 0 : index
    %c0_20 = arith.constant 0 : index
    %34 = vector.load %arg8[%c0_19, %c0_20] : memref<128x1xf32, #tpu.memory_space<vmem>>, vector<128x1xf32>
    tpu.vector_store %arg8[%c0_19, %c0_20], %33 {strides = array<i32>} : memref<128x1xf32, #tpu.memory_space<vmem>>, vector<128x1xf32>,
    return
  }
  func.func @transform_0(%arg0: i32) -> (i32, i32) {
    %c0_i32 = arith.constant 0 : i32
    %c0_i32_0 = arith.constant 0 : i32
    return %arg0, %c0_i32 : i32, i32
  }
  func.func @transform_1(%arg0: i32) -> (i32, i32) {
    %c0_i32 = arith.constant 0 : i32
    %c0_i32_0 = arith.constant 0 : i32
    %c0_i32_1 = arith.constant 0 : i32
    return %c0_i32, %c0_i32_0 : i32, i32
  }
  func.func @transform_2(%arg0: i32) -> (i32, i32) {
    %c0_i32 = arith.constant 0 : i32
    %c0_i32_0 = arith.constant 0 : i32
    %c0_i32_1 = arith.constant 0 : i32
    return %c0_i32, %c0_i32_0 : i32, i32
  }
  func.func @transform_3(%arg0: i32) -> (i32, i32) {
    %c0_i32 = arith.constant 0 : i32
    %c0_i32_0 = arith.constant 0 : i32
    %c0_i32_1 = arith.constant 0 : i32
    return %c0_i32, %c0_i32_0 : i32, i32
  }
  func.func @transform_4(%arg0: i32) -> (i32, i32) {
    %c0_i32 = arith.constant 0 : i32
    %c0_i32_0 = arith.constant 0 : i32
    return %arg0, %c0_i32 : i32, i32
  }
  func.func @transform_5(%arg0: i32) -> (i32, i32) {
    %c0_i32 = arith.constant 0 : i32
    %c0_i32_0 = arith.constant 0 : i32
    return %arg0, %c0_i32 : i32, i32
  }
  func.func @transform_6(%arg0: i32) -> (i32, i32) {
    %c0_i32 = arith.constant 0 : i32
    %c0_i32_0 = arith.constant 0 : i32
    return %arg0, %c0_i32 : i32, i32
  }
  func.func @transform_7(%arg0: i32) -> (i32, i32) {
    %c0_i32 = arith.constant 0 : i32
    %c0_i32_0 = arith.constant 0 : i32
    return %arg0, %c0_i32 : i32, i32
  }
}

</mosaic_0001>

<llo_original>
// kernel: squeeze.3
$region0: #{squeeze.3}
  %s0 = inlined_call_operand.vmem [shape: s32[128], index: 0, kind: input, shape index: {}]
  %s1 = inlined_call_operand.hbm [shape: s32[2,8,8], index: 1, kind: output, shape index: {}]
  $region1: #{squeeze.3} parent=0
    #allocation0 [shape = 'u8[8192]{0}', space=vmem, size = 0x2000, scoped, tag = 'operand span for operand 1']
    #allocation1 [shape = 's32[1]{0}', space=sflag, size = 0x4, scoped, tag = 'scoped memory for squeeze.3']
    #allocation2 [shape = 'u8[4096]{0}', space=vmem, size = 0x1000, scoped, tag = 'scoped mem for input reshape']
    %2 = vsyncpa [#allocation1], 0
    %s4 = sshllo.u32 0, 1
    %v5 = vld [vmem:[%s0] sm:%s4]
    %6 = vst [vmem:[#allocation2] sm:%s4] %v5
    %v7 = vld [vmem:[#allocation2] sm:$0x1]
    %vm8 = vcmask 64512
    %9 = vst.msk [vmem:[#allocation0] sm:$0x1] %vm8, %v7
    %v10 = vld [vmem:[#allocation2] sm:$0x1]
    %11 = vrot.lane.b32.xlu0 %v10, 120
    %v12 = vpop.permute.xlu0 %11
    %vm13 = vcmask 64512
    %s14 = scalar_lea.vmem [#allocation0], 1
    %15 = vst.msk [vmem:[%s14] sm:$0x1] %vm13, %v12
    %v16 = vld [vmem:[#allocation2] sm:$0x1]
    %17 = vrot.lane.b32.xlu0 %v16, 112
    %v18 = vpop.permute.xlu0 %17
    %vm19 = vcmask 64512
    %s20 = scalar_lea.vmem [#allocation0], 2
    %21 = vst.msk [vmem:[%s20] sm:$0x1] %vm19, %v18
    %v22 = vld [vmem:[#allocation2] sm:$0x1]
    %23 = vrot.lane.b32.xlu0 %v22, 104
    %v24 = vpop.permute.xlu0 %23
    %vm25 = vcmask 64512
    %s26 = scalar_lea.vmem [#allocation0], 3
    %27 = vst.msk [vmem:[%s26] sm:$0x1] %vm25, %v24
    %v28 = vld [vmem:[#allocation2] sm:$0x1]
    %29 = vrot.lane.b32.xlu0 %v28, 96
    %v30 = vpop.permute.xlu0 %29
    %vm31 = vcmask 64512
    %s32 = scalar_lea.vmem [#allocation0], 4
    %33 = vst.msk [vmem:[%s32] sm:$0x1] %vm31, %v30
    %v34 = vld [vmem:[#allocation2] sm:$0x1]
    %35 = vrot.lane.b32.xlu0 %v34, 88
    %v36 = vpop.permute.xlu0 %35
    %vm37 = vcmask 64512
    %s38 = scalar_lea.vmem [#allocation0], 5
    %39 = vst.msk [vmem:[%s38] sm:$0x1] %vm37, %v36
    %v40 = vld [vmem:[#allocation2] sm:$0x1]
    %41 = vrot.lane.b32.xlu0 %v40, 80
    %v42 = vpop.permute.xlu0 %41
    %vm43 = vcmask 64512
    %s44 = scalar_lea.vmem [#allocation0], 6
    %45 = vst.msk [vmem:[%s44] sm:$0x1] %vm43, %v42
    %v46 = vld [vmem:[#allocation2] sm:$0x1]
    %47 = vrot.lane.b32.xlu0 %v46, 72
    %v48 = vpop.permute.xlu0 %47
    %vm49 = vcmask 64512
    %s50 = scalar_lea.vmem [#allocation0], 7
    %51 = vst.msk [vmem:[%s50] sm:$0x1] %vm49, %v48
    %v52 = vld [vmem:[#allocation2] sm:$0x1]
    %53 = vrot.lane.b32.xlu0 %v52, 64
    %v54 = vpop.permute.xlu0 %53
    %vm55 = vcmask 64512
    %s56 = scalar_lea.vmem [#allocation0], 8
    %57 = vst.msk [vmem:[%s56] sm:$0x1] %vm55, %v54
    %v58 = vld [vmem:[#allocation2] sm:$0x1]
    %59 = vrot.lane.b32.xlu0 %v58, 56
    %v60 = vpop.permute.xlu0 %59
    %vm61 = vcmask 64512
    %s62 = scalar_lea.vmem [#allocation0], 9
    %63 = vst.msk [vmem:[%s62] sm:$0x1] %vm61, %v60
    %v64 = vld [vmem:[#allocation2] sm:$0x1]
    %65 = vrot.lane.b32.xlu0 %v64, 48
    %v66 = vpop.permute.xlu0 %65
    %vm67 = vcmask 64512
    %s68 = scalar_lea.vmem [#allocation0], 10
    %69 = vst.msk [vmem:[%s68] sm:$0x1] %vm67, %v66
    %v70 = vld [vmem:[#allocation2] sm:$0x1]
    %71 = vrot.lane.b32.xlu0 %v70, 40
    %v72 = vpop.permute.xlu0 %71
    %vm73 = vcmask 64512
    %s74 = scalar_lea.vmem [#allocation0], 11
    %75 = vst.msk [vmem:[%s74] sm:$0x1] %vm73, %v72
    %v76 = vld [vmem:[#allocation2] sm:$0x1]
    %77 = vrot.lane.b32.xlu0 %v76, 32
    %v78 = vpop.permute.xlu0 %77
    %vm79 = vcmask 64512
    %s80 = scalar_lea.vmem [#allocation0], 12
    %81 = vst.msk [vmem:[%s80] sm:$0x1] %vm79, %v78
    %v82 = vld [vmem:[#allocation2] sm:$0x1]
    %83 = vrot.lane.b32.xlu0 %v82, 24
    %v84 = vpop.permute.xlu0 %83
    %vm85 = vcmask 64512
    %s86 = scalar_lea.vmem [#allocation0], 13
    %87 = vst.msk [vmem:[%s86] sm:$0x1] %vm85, %v84
    %v88 = vld [vmem:[#allocation2] sm:$0x1]
    %89 = vrot.lane.b32.xlu0 %v88, 16
    %v90 = vpop.permute.xlu0 %89
    %vm91 = vcmask 64512
    %s92 = scalar_lea.vmem [#allocation0], 14
    %93 = vst.msk [vmem:[%s92] sm:$0x1] %vm91, %v90
    %v94 = vld [vmem:[#allocation2] sm:$0x1]
    %95 = vrot.lane.b32.xlu0 %v94, 8
    %v96 = vpop.permute.xlu0 %95
    %vm97 = vcmask 64512
    %s98 = scalar_lea.vmem [#allocation0], 15
    %99 = vst.msk [vmem:[%s98] sm:$0x1] %vm97, %v96
    %s101 = ssub.s32 256, 256
    %102 = vsyncadd [#allocation1], %s101
    %s104 = sshll.u32 [#allocation0], 4
    %s105 = int_to_ptr.vmem [resolvable:$true] %s104
    %107 = dma.vmem_to_hbm [thread:$0]  %s105, 256, %s1, [#allocation1]
    %108 = dma.done [#allocation1], 256
    %109 = vsyncpa [#allocation1], 1

// kernel: ema_quantize_forward.1
$region0: #{ema_quantize_forward.1}
  #allocation0 [shape = 'u32[]', space=smem, size = 0x4, offset = 0x4, fixed_abs, tag = 'smem constant byte address 0x4 - core index']
  #allocation1 [shape = 'u32[144,128]{1,0:T(1,128)}', space=vmem, size = 0x12000, scoped, tag = 'internal scratch']
  %s0 = inlined_call_operand.vmem [shape: f32[128,32], index: 0, kind: input, shape index: {}]
  %s1 = inlined_call_operand.vmem [shape: f32[32,128], index: 1, kind: input, shape index: {}]
  %s2 = inlined_call_operand.vmem [shape: f32[128,32], index: 2, kind: input, shape index: {}]
  %s3 = inlined_call_operand.vmem [shape: f32[1,128], index: 3, kind: input, shape index: {}]
  %s4 = inlined_call_operand.hbm [shape: f32[128,32], index: 4, kind: output, shape index: {0}]
  %s5 = inlined_call_operand.vmem [shape: s32[128,1], index: 5, kind: output, shape index: {1}]
  %s6 = inlined_call_operand.vmem [shape: f32[8,128], index: 6, kind: output, shape index: {2}]
  %s7 = inlined_call_operand.vmem [shape: f32[128,1], index: 7, kind: output, shape index: {3}]
  %8 = xla_tuple %s4, %s5, %s6, %s7
  %s9 = sld [smem:[#allocation0]]
  $region50: #{ema_quantize_forward.1} parent=0
    _
  %s11 = ssub.s32 1, %s9
  %s12 = scalar_select 0, %s11, %s9
  $region1: #{ema_quantize_forward.1} parent=0
    #allocation2 [shape = 'u8[65536]{0}', space=vmem, size = 0x10000, scoped, tag = 'output window, operand 0, single buffered']
    #allocation3 [shape = 's32[1]{0}', space=sflag, size = 0x4, scoped, tag = 'scoped memory for ema_quantize_forward.1']
    %13 = vsyncpa [#allocation3], 0
    // Predicated region
    $region2: #{ema_quantize_forward.1} parent=1 // pred_check
      _
    $region3: #{ema_quantize_forward.1} parent=1 // pred_check_branch
      %15 = sbr.rel (0) target = $region5
    $region4: #{ema_quantize_forward.1} parent=1 // pred_region
      _
    $region5: #{ema_quantize_forward.1} parent=1 // pred_fallthru
      _
    // Predicated region
    $region6: #{ema_quantize_forward.1} parent=1 // pred_check
      _
    $region7: #{ema_quantize_forward.1} parent=1 // pred_check_branch
      %17 = sbr.rel (0) target = $region9
    $region8: #{ema_quantize_forward.1} parent=1 // pred_region
      _
    $region9: #{ema_quantize_forward.1} parent=1 // pred_fallthru
      _
    // Predicated region
    $region10: #{ema_quantize_forward.1} parent=1 // pred_check
      _
    $region11: #{ema_quantize_forward.1} parent=1 // pred_check_branch
      %19 = sbr.rel (0) target = $region13
    $region12: #{ema_quantize_forward.1} parent=1 // pred_region
      _
    $region13: #{ema_quantize_forward.1} parent=1 // pred_fallthru
      _
    // Predicated region
    $region14: #{ema_quantize_forward.1} parent=1 // pred_check
      _
    $region15: #{ema_quantize_forward.1} parent=1 // pred_check_branch
      %21 = sbr.rel (0) target = $region17
    $region16: #{ema_quantize_forward.1} parent=1 // pred_region
      _
    $region17: #{ema_quantize_forward.1} parent=1 // pred_fallthru
      _
    %v22 = vld [vmem:[%s0] sm:$0xff]
    %v23 = vld [vmem:[%s0 + $0x8] sm:$0xff]
    %v24 = vld [vmem:[%s0 + $0x10] sm:$0xff]
    %v25 = vld [vmem:[%s0 + $0x18] sm:$0xff]
    %v26 = vld [vmem:[%s0 + $0x20] sm:$0xff]
    %v27 = vld [vmem:[%s0 + $0x28] sm:$0xff]
    %v28 = vld [vmem:[%s0 + $0x30] sm:$0xff]
    %v29 = vld [vmem:[%s0 + $0x38] sm:$0xff]
    %v30 = vld [vmem:[%s0 + $0x40] sm:$0xff]
    %v31 = vld [vmem:[%s0 + $0x48] sm:$0xff]
    %v32 = vld [vmem:[%s0 + $0x50] sm:$0xff]
    %v33 = vld [vmem:[%s0 + $0x58] sm:$0xff]
    %v34 = vld [vmem:[%s0 + $0x60] sm:$0xff]
    %v35 = vld [vmem:[%s0 + $0x68] sm:$0xff]
    %v36 = vld [vmem:[%s0 + $0x70] sm:$0xff]
    %v37 = vld [vmem:[%s0 + $0x78] sm:$0xff]
    %v38 = vmul.f32 %v22, -2.0
    %v39 = vmul.f32 %v23, -2.0
    %v40 = vmul.f32 %v24, -2.0
    %v41 = vmul.f32 %v25, -2.0
    %v42 = vmul.f32 %v26, -2.0
    %v43 = vmul.f32 %v27, -2.0
    %v44 = vmul.f32 %v28, -2.0
    %v45 = vmul.f32 %v29, -2.0
    %v46 = vmul.f32 %v30, -2.0
    %v47 = vmul.f32 %v31, -2.0
    %v48 = vmul.f32 %v32, -2.0
    %v49 = vmul.f32 %v33, -2.0
    %v50 = vmul.f32 %v34, -2.0
    %v51 = vmul.f32 %v35, -2.0
    %v52 = vmul.f32 %v36, -2.0
    %v53 = vmul.f32 %v37, -2.0
    %v54 = vld [vmem:[%s1] sm:$0xff]
    %v55 = vld [vmem:[%s1 + $0x8] sm:$0xff]
    %v56 = vld [vmem:[%s1 + $0x10] sm:$0xff]
    %v57 = vld [vmem:[%s1 + $0x18] sm:$0xff]
    %v58 = vld [vmem:[%s3] sm:$0x1]
    %v60 = vlaneseq
    %v61 = vshrl.u32 %v60, 7
    %v62 = vsub.s32 0, %v61
    %v63 = vrot.slane %v58, %v62
    %vm65 = vcmask 261120
    %v67 = vsel %vm65, %v38, 0
    %v70 = vsel %vm65, %v39, 0
    %v73 = vsel %vm65, %v40, 0
    %v76 = vsel %vm65, %v41, 0
    %v79 = vsel %vm65, %v42, 0
    %v82 = vsel %vm65, %v43, 0
    %v85 = vsel %vm65, %v44, 0
    %v88 = vsel %vm65, %v45, 0
    %v91 = vsel %vm65, %v46, 0
    %v94 = vsel %vm65, %v47, 0
    %v97 = vsel %vm65, %v48, 0
    %v100 = vsel %vm65, %v49, 0
    %v103 = vsel %vm65, %v50, 0
    %v106 = vsel %vm65, %v51, 0
    %v109 = vsel %vm65, %v52, 0
    %v112 = vsel %vm65, %v53, 0
    %114 = vmatprep.subr.mxu0 0.0
    %115 = vmatpush1.msra.mxu0 %v54
    %116 = vmatprep.subr.mxu0 0.0
    %117 = vmatpush1.msra.mxu0 %v55
    %118 = vmatprep.subr.mxu0 0.0
    %119 = vmatpush1.msra.mxu0 %v56
    %120 = vmatprep.subr.mxu0 0.0
    %121 = vmatpush1.msra.mxu0 %v57
    %122 = vmatprep.subr.mxu0 0.0
    %123 = vmatpush1.msra.mxu0 0.0
    %124 = vmatprep.subr.mxu0 0.0
    %125 = vmatpush1.msra.mxu0 0.0
    %126 = vmatprep.subr.mxu0 0.0
    %127 = vmatpush1.msra.mxu0 0.0
    %128 = vmatprep.subr.mxu0 0.0
    %129 = vmatpush1.msra.mxu0 0.0
    %130 = vmatprep.subr.mxu0 0.0
    %131 = vmatpush1.msra.mxu0 0.0
    %132 = vmatprep.subr.mxu0 0.0
    %133 = vmatpush1.msra.mxu0 0.0
    %134 = vmatprep.subr.mxu0 0.0
    %135 = vmatpush1.msra.mxu0 0.0
    %136 = vmatprep.subr.mxu0 0.0
    %137 = vmatpush1.msra.mxu0 0.0
    %138 = vmatprep.subr.mxu0 0.0
    %139 = vmatpush1.msra.mxu0 0.0
    %140 = vmatprep.subr.mxu0 0.0
    %141 = vmatpush1.msra.mxu0 0.0
    %142 = vmatprep.subr.mxu0 0.0
    %143 = vmatpush1.msra.mxu0 0.0
    %144 = vmatprep.subr.mxu0 0.0
    %145 = vmatpush1.msra.mxu0 0.0
    %146 = vmatprep.subr.mxu0 0.0
    %147 = vmatpush1.msra.mxu0 0.0
    %148 = vmatprep.subr.mxu0 0.0
    %149 = vmatpush1.msra.mxu0 0.0
    %150 = vmatprep.subr.mxu0 0.0
    %151 = vmatpush1.msra.mxu0 0.0
    %152 = vmatprep.subr.mxu0 0.0
    %153 = vmatpush1.msra.mxu0 0.0
    %154 = vmatprep.subr.mxu0 0.0
    %155 = vmatpush1.msra.mxu0 0.0
    %156 = vmatprep.subr.mxu0 0.0
    %157 = vmatpush1.msra.mxu0 0.0
    %158 = vmatprep.subr.mxu0 0.0
    %159 = vmatpush1.msra.mxu0 0.0
    %160 = vmatprep.subr.mxu0 0.0
    %161 = vmatpush1.msra.mxu0 0.0
    %162 = vmatprep.subr.mxu0 0.0
    %163 = vmatpush1.msra.mxu0 0.0
    %164 = vmatprep.subr.mxu0 0.0
    %165 = vmatpush1.msra.mxu0 0.0
    %166 = vmatprep.subr.mxu0 0.0
    %167 = vmatpush1.msra.mxu0 0.0
    %168 = vmatprep.subr.mxu0 0.0
    %169 = vmatpush1.msra.mxu0 0.0
    %170 = vmatprep.subr.mxu0 0.0
    %171 = vmatpush1.msra.mxu0 0.0
    %172 = vmatprep.subr.mxu0 0.0
    %173 = vmatpush1.msra.mxu0 0.0
    %174 = vmatprep.subr.mxu0 0.0
    %175 = vmatpush1.msra.mxu0 0.0
    %176 = vmatprep.subr.mxu0 0.0
    %177 = vmatpush1.msra.mxu0 0.0
    %178 = vmatprep.mubr.f32.mxu0 0.0
    %179 = vmatmul.mubr.f32.gmra.mrb[0].mxu0 %v67
    %v180 = vpop.f32.mrb[0].mxu0
    %v181 = vadd.f32 %v63, %v180
    %v182 = vpop.f32.mrb[0].mxu0
    %183 = vmatprep.mubr.f32.mxu0 0.0
    %184 = vmatmul.mubr.f32.gmra.mrb[0].mxu0 %v70
    %v185 = vpop.f32.mrb[0].mxu0
    %v186 = vadd.f32 %v63, %v185
    %v187 = vpop.f32.mrb[0].mxu0
    %188 = vmatprep.mubr.f32.mxu0 0.0
    %189 = vmatmul.mubr.f32.gmra.mrb[0].mxu0 %v73
    %v190 = vpop.f32.mrb[0].mxu0
    %v191 = vadd.f32 %v63, %v190
    %v192 = vpop.f32.mrb[0].mxu0
    %193 = vmatprep.mubr.f32.mxu0 0.0
    %194 = vmatmul.mubr.f32.gmra.mrb[0].mxu0 %v76
    %v195 = vpop.f32.mrb[0].mxu0
    %v196 = vadd.f32 %v63, %v195
    %v197 = vpop.f32.mrb[0].mxu0
    %198 = vmatprep.mubr.f32.mxu0 0.0
    %199 = vmatmul.mubr.f32.gmra.mrb[0].mxu0 %v79
    %v200 = vpop.f32.mrb[0].mxu0
    %v201 = vadd.f32 %v63, %v200
    %v202 = vpop.f32.mrb[0].mxu0
    %203 = vmatprep.mubr.f32.mxu0 0.0
    %204 = vmatmul.mubr.f32.gmra.mrb[0].mxu0 %v82
    %v205 = vpop.f32.mrb[0].mxu0
    %v206 = vadd.f32 %v63, %v205
    %v207 = vpop.f32.mrb[0].mxu0
    %208 = vmatprep.mubr.f32.mxu0 0.0
    %209 = vmatmul.mubr.f32.gmra.mrb[0].mxu0 %v85
    %v210 = vpop.f32.mrb[0].mxu0
    %v211 = vadd.f32 %v63, %v210
    %v212 = vpop.f32.mrb[0].mxu0
    %213 = vmatprep.mubr.f32.mxu0 0.0
    %214 = vmatmul.mubr.f32.gmra.mrb[0].mxu0 %v88
    %v215 = vpop.f32.mrb[0].mxu0
    %v216 = vadd.f32 %v63, %v215
    %v217 = vpop.f32.mrb[0].mxu0
    %218 = vmatprep.mubr.f32.mxu0 0.0
    %219 = vmatmul.mubr.f32.gmra.mrb[0].mxu0 %v91
    %v220 = vpop.f32.mrb[0].mxu0
    %v221 = vadd.f32 %v63, %v220
    %v222 = vpop.f32.mrb[0].mxu0
    %223 = vmatprep.mubr.f32.mxu0 0.0
    %224 = vmatmul.mubr.f32.gmra.mrb[0].mxu0 %v94
    %v225 = vpop.f32.mrb[0].mxu0
    %v226 = vadd.f32 %v63, %v225
    %v227 = vpop.f32.mrb[0].mxu0
    %228 = vmatprep.mubr.f32.mxu0 0.0
    %229 = vmatmul.mubr.f32.gmra.mrb[0].mxu0 %v97
    %v230 = vpop.f32.mrb[0].mxu0
    %v231 = vadd.f32 %v63, %v230
    %v232 = vpop.f32.mrb[0].mxu0
    %233 = vmatprep.mubr.f32.mxu0 0.0
    %234 = vmatmul.mubr.f32.gmra.mrb[0].mxu0 %v100
    %v235 = vpop.f32.mrb[0].mxu0
    %v236 = vadd.f32 %v63, %v235
    %v237 = vpop.f32.mrb[0].mxu0
    %238 = vmatprep.mubr.f32.mxu0 0.0
    %239 = vmatmul.mubr.f32.gmra.mrb[0].mxu0 %v103
    %v240 = vpop.f32.mrb[0].mxu0
    %v241 = vadd.f32 %v63, %v240
    %v242 = vpop.f32.mrb[0].mxu0
    %243 = vmatprep.mubr.f32.mxu0 0.0
    %244 = vmatmul.mubr.f32.gmra.mrb[0].mxu0 %v106
    %v245 = vpop.f32.mrb[0].mxu0
    %v246 = vadd.f32 %v63, %v245
    %v247 = vpop.f32.mrb[0].mxu0
    %248 = vmatprep.mubr.f32.mxu0 0.0
    %249 = vmatmul.mubr.f32.gmra.mrb[0].mxu0 %v109
    %v250 = vpop.f32.mrb[0].mxu0
    %v251 = vadd.f32 %v63, %v250
    %v252 = vpop.f32.mrb[0].mxu0
    %253 = vmatprep.mubr.f32.mxu0 0.0
    %254 = vmatmul.mubr.f32.gmra.mrb[0].mxu0 %v112
    %v255 = vpop.f32.mrb[0].mxu0
    %v256 = vadd.f32 %v63, %v255
    %v257 = vpop.f32.mrb[0].mxu0
    %258 = vdwg.mxu0
    %259 = vmin.index.xlane.f32.xlu0 %v181
    %v260 = vpop.xlane.xlu0 %259
    %261 = vmin.index.xlane.f32.xlu0 %v186
    %v262 = vpop.xlane.xlu0 %261
    %263 = vmin.index.xlane.f32.xlu0 %v191
    %v264 = vpop.xlane.xlu0 %263
    %265 = vmin.index.xlane.f32.xlu0 %v196
    %v266 = vpop.xlane.xlu0 %265
    %267 = vmin.index.xlane.f32.xlu0 %v201
    %v268 = vpop.xlane.xlu0 %267
    %269 = vmin.index.xlane.f32.xlu0 %v206
    %v270 = vpop.xlane.xlu0 %269
    %271 = vmin.index.xlane.f32.xlu0 %v211
    %v272 = vpop.xlane.xlu0 %271
    %273 = vmin.index.xlane.f32.xlu0 %v216
    %v274 = vpop.xlane.xlu0 %273
    %275 = vmin.index.xlane.f32.xlu0 %v221
    %v276 = vpop.xlane.xlu0 %275
    %277 = vmin.index.xlane.f32.xlu0 %v226
    %v278 = vpop.xlane.xlu0 %277
    %279 = vmin.index.xlane.f32.xlu0 %v231
    %v280 = vpop.xlane.xlu0 %279
    %281 = vmin.index.xlane.f32.xlu0 %v236
    %v282 = vpop.xlane.xlu0 %281
    %283 = vmin.index.xlane.f32.xlu0 %v241
    %v284 = vpop.xlane.xlu0 %283
    %285 = vmin.index.xlane.f32.xlu0 %v246
    %v286 = vpop.xlane.xlu0 %285
    %287 = vmin.index.xlane.f32.xlu0 %v251
    %v288 = vpop.xlane.xlu0 %287
    %289 = vmin.index.xlane.f32.xlu0 %v256
    %v290 = vpop.xlane.xlu0 %289
    %vm291 = vcmask 7168
    %292 = vst.msk [vmem:[%s5] sm:$0xff] %vm291, %v260
    %293 = vst.msk [vmem:[%s5 + $0x8] sm:$0xff] %vm291, %v262
    %294 = vst.msk [vmem:[%s5 + $0x10] sm:$0xff] %vm291, %v264
    %295 = vst.msk [vmem:[%s5 + $0x18] sm:$0xff] %vm291, %v266
    %296 = vst.msk [vmem:[%s5 + $0x20] sm:$0xff] %vm291, %v268
    %297 = vst.msk [vmem:[%s5 + $0x28] sm:$0xff] %vm291, %v270
    %298 = vst.msk [vmem:[%s5 + $0x30] sm:$0xff] %vm291, %v272
    %299 = vst.msk [vmem:[%s5 + $0x38] sm:$0xff] %vm291, %v274
    %300 = vst.msk [vmem:[%s5 + $0x40] sm:$0xff] %vm291, %v276
    %301 = vst.msk [vmem:[%s5 + $0x48] sm:$0xff] %vm291, %v278
    %302 = vst.msk [vmem:[%s5 + $0x50] sm:$0xff] %vm291, %v280
    %303 = vst.msk [vmem:[%s5 + $0x58] sm:$0xff] %vm291, %v282
    %304 = vst.msk [vmem:[%s5 + $0x60] sm:$0xff] %vm291, %v284
    %305 = vst.msk [vmem:[%s5 + $0x68] sm:$0xff] %vm291, %v286
    %306 = vst.msk [vmem:[%s5 + $0x70] sm:$0xff] %vm291, %v288
    %307 = vst.msk [vmem:[%s5 + $0x78] sm:$0xff] %vm291, %v290
    %v308 = vlaneseq
    %v309 = vand.u32 %v308, 127
    %vm310 = vcmp.eq.s32.totalorder %v260, %v309
    %vm311 = vcmp.eq.s32.totalorder %v262, %v309
    %vm312 = vcmp.eq.s32.totalorder %v264, %v309
    %vm313 = vcmp.eq.s32.totalorder %v266, %v309
    %vm314 = vcmp.eq.s32.totalorder %v268, %v309
    %vm315 = vcmp.eq.s32.totalorder %v270, %v309
    %vm316 = vcmp.eq.s32.totalorder %v272, %v309
    %vm317 = vcmp.eq.s32.totalorder %v274, %v309
    %vm318 = vcmp.eq.s32.totalorder %v276, %v309
    %vm319 = vcmp.eq.s32.totalorder %v278, %v309
    %vm320 = vcmp.eq.s32.totalorder %v280, %v309
    %vm321 = vcmp.eq.s32.totalorder %v282, %v309
    %vm322 = vcmp.eq.s32.totalorder %v284, %v309
    %vm323 = vcmp.eq.s32.totalorder %v286, %v309
    %vm324 = vcmp.eq.s32.totalorder %v288, %v309
    %vm325 = vcmp.eq.s32.totalorder %v290, %v309
    %v326 = vsel %vm310, 1, 0
    %v327 = vsel %vm311, 1, 0
    %v328 = vsel %vm312, 1, 0
    %v329 = vsel %vm313, 1, 0
    %v330 = vsel %vm314, 1, 0
    %v331 = vsel %vm315, 1, 0
    %v332 = vsel %vm316, 1, 0
    %v333 = vsel %vm317, 1, 0
    %v334 = vsel %vm318, 1, 0
    %v335 = vsel %vm319, 1, 0
    %v336 = vsel %vm320, 1, 0
    %v337 = vsel %vm321, 1, 0
    %v338 = vsel %vm322, 1, 0
    %v339 = vsel %vm323, 1, 0
    %v340 = vsel %vm324, 1, 0
    %v341 = vsel %vm325, 1, 0
    %v342 = vcvt.s32.f32 %v326
    %v343 = vcvt.s32.f32 %v327
    %v344 = vcvt.s32.f32 %v328
    %v345 = vcvt.s32.f32 %v329
    %v346 = vcvt.s32.f32 %v330
    %v347 = vcvt.s32.f32 %v331
    %v348 = vcvt.s32.f32 %v332
    %v349 = vcvt.s32.f32 %v333
    %v350 = vcvt.s32.f32 %v334
    %v351 = vcvt.s32.f32 %v335
    %v352 = vcvt.s32.f32 %v336
    %v353 = vcvt.s32.f32 %v337
    %v354 = vcvt.s32.f32 %v338
    %v355 = vcvt.s32.f32 %v339
    %v356 = vcvt.s32.f32 %v340
    %v357 = vcvt.s32.f32 %v341
    %v358 = vld [vmem:[%s2] sm:$0xff]
    %v359 = vld [vmem:[%s2 + $0x8] sm:$0xff]
    %v360 = vld [vmem:[%s2 + $0x10] sm:$0xff]
    %v361 = vld [vmem:[%s2 + $0x18] sm:$0xff]
    %v362 = vld [vmem:[%s2 + $0x20] sm:$0xff]
    %v363 = vld [vmem:[%s2 + $0x28] sm:$0xff]
    %v364 = vld [vmem:[%s2 + $0x30] sm:$0xff]
    %v365 = vld [vmem:[%s2 + $0x38] sm:$0xff]
    %v366 = vld [vmem:[%s2 + $0x40] sm:$0xff]
    %v367 = vld [vmem:[%s2 + $0x48] sm:$0xff]
    %v368 = vld [vmem:[%s2 + $0x50] sm:$0xff]
    %v369 = vld [vmem:[%s2 + $0x58] sm:$0xff]
    %v370 = vld [vmem:[%s2 + $0x60] sm:$0xff]
    %v371 = vld [vmem:[%s2 + $0x68] sm:$0xff]
    %v372 = vld [vmem:[%s2 + $0x70] sm:$0xff]
    %v373 = vld [vmem:[%s2 + $0x78] sm:$0xff]
    %374 = vmatprep.subr.mxu0 0.0
    %375 = vmatpush1.msra.mxu0 %v358
    %376 = vmatprep.subr.mxu0 0.0
    %377 = vmatpush1.msra.mxu0 %v359
    %378 = vmatprep.subr.mxu0 0.0
    %379 = vmatpush1.msra.mxu0 %v360
    %380 = vmatprep.subr.mxu0 0.0
    %381 = vmatpush1.msra.mxu0 %v361
    %382 = vmatprep.subr.mxu0 0.0
    %383 = vmatpush1.msra.mxu0 %v362
    %384 = vmatprep.subr.mxu0 0.0
    %385 = vmatpush1.msra.mxu0 %v363
    %386 = vmatprep.subr.mxu0 0.0
    %387 = vmatpush1.msra.mxu0 %v364
    %388 = vmatprep.subr.mxu0 0.0
    %389 = vmatpush1.msra.mxu0 %v365
    %390 = vmatprep.subr.mxu0 0.0
    %391 = vmatpush1.msra.mxu0 %v366
    %392 = vmatprep.subr.mxu0 0.0
    %393 = vmatpush1.msra.mxu0 %v367
    %394 = vmatprep.subr.mxu0 0.0
    %395 = vmatpush1.msra.mxu0 %v368
    %396 = vmatprep.subr.mxu0 0.0
    %397 = vmatpush1.msra.mxu0 %v369
    %398 = vmatprep.subr.mxu0 0.0
    %399 = vmatpush1.msra.mxu0 %v370
    %400 = vmatprep.subr.mxu0 0.0
    %401 = vmatpush1.msra.mxu0 %v371
    %402 = vmatprep.subr.mxu0 0.0
    %403 = vmatpush1.msra.mxu0 %v372
    %404 = vmatprep.subr.mxu0 0.0
    %405 = vmatpush1.msra.mxu0 %v373
    %406 = vmatprep.subr.mxu0 0.0
    %407 = vmatpush1.msra.mxu0 0.0
    %408 = vmatprep.subr.mxu0 0.0
    %409 = vmatpush1.msra.mxu0 0.0
    %410 = vmatprep.subr.mxu0 0.0
    %411 = vmatpush1.msra.mxu0 0.0
    %412 = vmatprep.subr.mxu0 0.0
    %413 = vmatpush1.msra.mxu0 0.0
    %414 = vmatprep.subr.mxu0 0.0
    %415 = vmatpush1.msra.mxu0 0.0
    %416 = vmatprep.subr.mxu0 0.0
    %417 = vmatpush1.msra.mxu0 0.0
    %418 = vmatprep.subr.mxu0 0.0
    %419 = vmatpush1.msra.mxu0 0.0
    %420 = vmatprep.subr.mxu0 0.0
    %421 = vmatpush1.msra.mxu0 0.0
    %422 = vmatprep.subr.mxu0 0.0
    %423 = vmatpush1.msra.mxu0 0.0
    %424 = vmatprep.subr.mxu0 0.0
    %425 = vmatpush1.msra.mxu0 0.0
    %426 = vmatprep.subr.mxu0 0.0
    %427 = vmatpush1.msra.mxu0 0.0
    %428 = vmatprep.subr.mxu0 0.0
    %429 = vmatpush1.msra.mxu0 0.0
    %430 = vmatprep.subr.mxu0 0.0
    %431 = vmatpush1.msra.mxu0 0.0
    %432 = vmatprep.subr.mxu0 0.0
    %433 = vmatpush1.msra.mxu0 0.0
    %434 = vmatprep.subr.mxu0 0.0
    %435 = vmatpush1.msra.mxu0 0.0
    %436 = vmatprep.subr.mxu0 0.0
    %437 = vmatpush1.msra.mxu0 0.0
    %438 = vmatprep.mubr.f32.mxu0 0.0
    %439 = vmatmul.mubr.f32.gmra.mrb[0].mxu0 %v342
    %v440 = vpop.f32.mrb[0].mxu0
    %v441 = vadd.f32 0.0, %v440
    %v442 = vpop.f32.mrb[0].mxu0
    %443 = vmatprep.mubr.f32.mxu0 0.0
    %444 = vmatmul.mubr.f32.gmra.mrb[0].mxu0 %v343
    %v445 = vpop.f32.mrb[0].mxu0
    %v446 = vadd.f32 0.0, %v445
    %v447 = vpop.f32.mrb[0].mxu0
    %448 = vmatprep.mubr.f32.mxu0 0.0
    %449 = vmatmul.mubr.f32.gmra.mrb[0].mxu0 %v344
    %v450 = vpop.f32.mrb[0].mxu0
    %v451 = vadd.f32 0.0, %v450
    %v452 = vpop.f32.mrb[0].mxu0
    %453 = vmatprep.mubr.f32.mxu0 0.0
    %454 = vmatmul.mubr.f32.gmra.mrb[0].mxu0 %v345
    %v455 = vpop.f32.mrb[0].mxu0
    %v456 = vadd.f32 0.0, %v455
    %v457 = vpop.f32.mrb[0].mxu0
    %458 = vmatprep.mubr.f32.mxu0 0.0
    %459 = vmatmul.mubr.f32.gmra.mrb[0].mxu0 %v346
    %v460 = vpop.f32.mrb[0].mxu0
    %v461 = vadd.f32 0.0, %v460
    %v462 = vpop.f32.mrb[0].mxu0
    %463 = vmatprep.mubr.f32.mxu0 0.0
    %464 = vmatmul.mubr.f32.gmra.mrb[0].mxu0 %v347
    %v465 = vpop.f32.mrb[0].mxu0
    %v466 = vadd.f32 0.0, %v465
    %v467 = vpop.f32.mrb[0].mxu0
    %468 = vmatprep.mubr.f32.mxu0 0.0
    %469 = vmatmul.mubr.f32.gmra.mrb[0].mxu0 %v348
    %v470 = vpop.f32.mrb[0].mxu0
    %v471 = vadd.f32 0.0, %v470
    %v472 = vpop.f32.mrb[0].mxu0
    %473 = vmatprep.mubr.f32.mxu0 0.0
    %474 = vmatmul.mubr.f32.gmra.mrb[0].mxu0 %v349
    %v475 = vpop.f32.mrb[0].mxu0
    %v476 = vadd.f32 0.0, %v475
    %v477 = vpop.f32.mrb[0].mxu0
    %478 = vmatprep.mubr.f32.mxu0 0.0
    %479 = vmatmul.mubr.f32.gmra.mrb[0].mxu0 %v350
    %v480 = vpop.f32.mrb[0].mxu0
    %v481 = vadd.f32 0.0, %v480
    %v482 = vpop.f32.mrb[0].mxu0
    %483 = vmatprep.mubr.f32.mxu0 0.0
    %484 = vmatmul.mubr.f32.gmra.mrb[0].mxu0 %v351
    %v485 = vpop.f32.mrb[0].mxu0
    %v486 = vadd.f32 0.0, %v485
    %v487 = vpop.f32.mrb[0].mxu0
    %488 = vmatprep.mubr.f32.mxu0 0.0
    %489 = vmatmul.mubr.f32.gmra.mrb[0].mxu0 %v352
    %v490 = vpop.f32.mrb[0].mxu0
    %v491 = vadd.f32 0.0, %v490
    %v492 = vpop.f32.mrb[0].mxu0
    %493 = vmatprep.mubr.f32.mxu0 0.0
    %494 = vmatmul.mubr.f32.gmra.mrb[0].mxu0 %v353
    %v495 = vpop.f32.mrb[0].mxu0
    %v496 = vadd.f32 0.0, %v495
    %v497 = vpop.f32.mrb[0].mxu0
    %498 = vmatprep.mubr.f32.mxu0 0.0
    %499 = vmatmul.mubr.f32.gmra.mrb[0].mxu0 %v354
    %v500 = vpop.f32.mrb[0].mxu0
    %v501 = vadd.f32 0.0, %v500
    %v502 = vpop.f32.mrb[0].mxu0
    %503 = vmatprep.mubr.f32.mxu0 0.0
    %504 = vmatmul.mubr.f32.gmra.mrb[0].mxu0 %v355
    %v505 = vpop.f32.mrb[0].mxu0
    %v506 = vadd.f32 0.0, %v505
    %v507 = vpop.f32.mrb[0].mxu0
    %508 = vmatprep.mubr.f32.mxu0 0.0
    %509 = vmatmul.mubr.f32.gmra.mrb[0].mxu0 %v356
    %v510 = vpop.f32.mrb[0].mxu0
    %v511 = vadd.f32 0.0, %v510
    %v512 = vpop.f32.mrb[0].mxu0
    %513 = vmatprep.mubr.f32.mxu0 0.0
    %514 = vmatmul.mubr.f32.gmra.mrb[0].mxu0 %v357
    %v515 = vpop.f32.mrb[0].mxu0
    %v516 = vadd.f32 0.0, %v515
    %v517 = vpop.f32.mrb[0].mxu0
    %518 = vdwg.mxu0
    %519 = vst.msk [vmem:[#allocation2] sm:$0xff] %vm65, %v441
    %520 = vst.msk [vmem:[#allocation2 + $0x8] sm:$0xff] %vm65, %v446
    %521 = vst.msk [vmem:[#allocation2 + $0x10] sm:$0xff] %vm65, %v451
    %522 = vst.msk [vmem:[#allocation2 + $0x18] sm:$0xff] %vm65, %v456
    %523 = vst.msk [vmem:[#allocation2 + $0x20] sm:$0xff] %vm65, %v461
    %524 = vst.msk [vmem:[#allocation2 + $0x28] sm:$0xff] %vm65, %v466
    %525 = vst.msk [vmem:[#allocation2 + $0x30] sm:$0xff] %vm65, %v471
    %526 = vst.msk [vmem:[#allocation2 + $0x38] sm:$0xff] %vm65, %v476
    %527 = vst.msk [vmem:[#allocation2 + $0x40] sm:$0xff] %vm65, %v481
    %528 = vst.msk [vmem:[#allocation2 + $0x48] sm:$0xff] %vm65, %v486
    %529 = vst.msk [vmem:[#allocation2 + $0x50] sm:$0xff] %vm65, %v491
    %530 = vst.msk [vmem:[#allocation2 + $0x58] sm:$0xff] %vm65, %v496
    %531 = vst.msk [vmem:[#allocation2 + $0x60] sm:$0xff] %vm65, %v501
    %532 = vst.msk [vmem:[#allocation2 + $0x68] sm:$0xff] %vm65, %v506
    %533 = vst.msk [vmem:[#allocation2 + $0x70] sm:$0xff] %vm65, %v511
    %534 = vst.msk [vmem:[#allocation2 + $0x78] sm:$0xff] %vm65, %v516
    %535 = vmatprep.subr.mxu0 0.0
    %536 = vmatpush1.msra.mxu0 %v342
    %537 = vmatprep.subr.mxu0 0.0
    %538 = vmatpush1.msra.mxu0 %v343
    %539 = vmatprep.subr.mxu0 0.0
    %540 = vmatpush1.msra.mxu0 %v344
    %541 = vmatprep.subr.mxu0 0.0
    %542 = vmatpush1.msra.mxu0 %v345
    %543 = vmatprep.subr.mxu0 0.0
    %544 = vmatpush1.msra.mxu0 %v346
    %545 = vmatprep.subr.mxu0 0.0
    %546 = vmatpush1.msra.mxu0 %v347
    %547 = vmatprep.subr.mxu0 0.0
    %548 = vmatpush1.msra.mxu0 %v348
    %549 = vmatprep.subr.mxu0 0.0
    %550 = vmatpush1.msra.mxu0 %v349
    %551 = vmatprep.subr.mxu0 0.0
    %552 = vmatpush1.msra.mxu0 %v350
    %553 = vmatprep.subr.mxu0 0.0
    %554 = vmatpush1.msra.mxu0 %v351
    %555 = vmatprep.subr.mxu0 0.0
    %556 = vmatpush1.msra.mxu0 %v352
    %557 = vmatprep.subr.mxu0 0.0
    %558 = vmatpush1.msra.mxu0 %v353
    %559 = vmatprep.subr.mxu0 0.0
    %560 = vmatpush1.msra.mxu0 %v354
    %561 = vmatprep.subr.mxu0 0.0
    %562 = vmatpush1.msra.mxu0 %v355
    %563 = vmatprep.subr.mxu0 0.0
    %564 = vmatpush1.msra.mxu0 %v356
    %565 = vmatprep.subr.mxu0 0.0
    %566 = vmatpush1.msra.mxu0 %v357
    %567 = vmatprep.subr.mxu0 0.0
    %568 = vmatpush1.msra.mxu0 0.0
    %569 = vmatprep.subr.mxu0 0.0
    %570 = vmatpush1.msra.mxu0 0.0
    %571 = vmatprep.subr.mxu0 0.0
    %572 = vmatpush1.msra.mxu0 0.0
    %573 = vmatprep.subr.mxu0 0.0
    %574 = vmatpush1.msra.mxu0 0.0
    %575 = vmatprep.subr.mxu0 0.0
    %576 = vmatpush1.msra.mxu0 0.0
    %577 = vmatprep.subr.mxu0 0.0
    %578 = vmatpush1.msra.mxu0 0.0
    %579 = vmatprep.subr.mxu0 0.0
    %580 = vmatpush1.msra.mxu0 0.0
    %581 = vmatprep.subr.mxu0 0.0
    %582 = vmatpush1.msra.mxu0 0.0
    %583 = vmatprep.subr.mxu0 0.0
    %584 = vmatpush1.msra.mxu0 0.0
    %585 = vmatprep.subr.mxu0 0.0
    %586 = vmatpush1.msra.mxu0 0.0
    %587 = vmatprep.subr.mxu0 0.0
    %588 = vmatpush1.msra.mxu0 0.0
    %589 = vmatprep.subr.mxu0 0.0
    %590 = vmatpush1.msra.mxu0 0.0
    %591 = vmatprep.subr.mxu0 0.0
    %592 = vmatpush1.msra.mxu0 0.0
    %593 = vmatprep.subr.mxu0 0.0
    %594 = vmatpush1.msra.mxu0 0.0
    %595 = vmatprep.subr.mxu0 0.0
    %596 = vmatpush1.msra.mxu0 0.0
    %597 = vmatprep.subr.mxu0 0.0
    %598 = vmatpush1.msra.mxu0 0.0
    %599 = vmatprep.mubr.f32.mxu0 0.0
    %600 = vmatmul.mubr.f32.gmra.mrb[0].mxu0 1.0
    %v601 = vpop.f32.mrb[0].mxu0
    %v602 = vadd.f32 0.0, %v601
    %v603 = vpop.f32.mrb[0].mxu0
    %604 = vdwg.mxu0
    %v605 = vlaneseq
    %v606 = vshrl.u32 %v605, 7
    %vm607 = vcmp.eq.s32.totalorder %v606, 0
    %v608 = vlaneseq
    %v609 = vshrl.u32 %v608, 7
    %v610 = vsub.s32 0, %v609
    %v611 = vrot.slane %v602, %v610
    %v612 = vsel %vm607, %v611, 0.0
    %613 = vst [vmem:[%s6] sm:$0xff] %v612
    %v614 = vsub.f32 %v441, %v22
    %v615 = vsub.f32 %v446, %v23
    %v616 = vsub.f32 %v451, %v24
    %v617 = vsub.f32 %v456, %v25
    %v618 = vsub.f32 %v461, %v26
    %v619 = vsub.f32 %v466, %v27
    %v620 = vsub.f32 %v471, %v28
    %v621 = vsub.f32 %v476, %v29
    %v622 = vsub.f32 %v481, %v30
    %v623 = vsub.f32 %v486, %v31
    %v624 = vsub.f32 %v491, %v32
    %v625 = vsub.f32 %v496, %v33
    %v626 = vsub.f32 %v501, %v34
    %v627 = vsub.f32 %v506, %v35
    %v628 = vsub.f32 %v511, %v36
    %v629 = vsub.f32 %v516, %v37
    %v630 = vmul.f32 %v614, %v614
    %v631 = vmul.f32 %v615, %v615
    %v632 = vmul.f32 %v616, %v616
    %v633 = vmul.f32 %v617, %v617
    %v634 = vmul.f32 %v618, %v618
    %v635 = vmul.f32 %v619, %v619
    %v636 = vmul.f32 %v620, %v620
    %v637 = vmul.f32 %v621, %v621
    %v638 = vmul.f32 %v622, %v622
    %v639 = vmul.f32 %v623, %v623
    %v640 = vmul.f32 %v624, %v624
    %v641 = vmul.f32 %v625, %v625
    %v642 = vmul.f32 %v626, %v626
    %v643 = vmul.f32 %v627, %v627
    %v644 = vmul.f32 %v628, %v628
    %v645 = vmul.f32 %v629, %v629
    %v646 = vsel %vm65, %v630, 0.0
    %647 = vadd.xlane.f32.xlu0 %v646
    %v648 = vpop.xlane.xlu0 %647
    %v649 = vsel %vm65, %v631, 0.0
    %650 = vadd.xlane.f32.xlu0 %v649
    %v651 = vpop.xlane.xlu0 %650
    %v652 = vsel %vm65, %v632, 0.0
    %653 = vadd.xlane.f32.xlu0 %v652
    %v654 = vpop.xlane.xlu0 %653
    %v655 = vsel %vm65, %v633, 0.0
    %656 = vadd.xlane.f32.xlu0 %v655
    %v657 = vpop.xlane.xlu0 %656
    %v658 = vsel %vm65, %v634, 0.0
    %659 = vadd.xlane.f32.xlu0 %v658
    %v660 = vpop.xlane.xlu0 %659
    %v661 = vsel %vm65, %v635, 0.0
    %662 = vadd.xlane.f32.xlu0 %v661
    %v663 = vpop.xlane.xlu0 %662
    %v664 = vsel %vm65, %v636, 0.0
    %665 = vadd.xlane.f32.xlu0 %v664
    %v666 = vpop.xlane.xlu0 %665
    %v667 = vsel %vm65, %v637, 0.0
    %668 = vadd.xlane.f32.xlu0 %v667
    %v669 = vpop.xlane.xlu0 %668
    %v670 = vsel %vm65, %v638, 0.0
    %671 = vadd.xlane.f32.xlu0 %v670
    %v672 = vpop.xlane.xlu0 %671
    %v673 = vsel %vm65, %v639, 0.0
    %674 = vadd.xlane.f32.xlu0 %v673
    %v675 = vpop.xlane.xlu0 %674
    %v676 = vsel %vm65, %v640, 0.0
    %677 = vadd.xlane.f32.xlu0 %v676
    %v678 = vpop.xlane.xlu0 %677
    %v679 = vsel %vm65, %v641, 0.0
    %680 = vadd.xlane.f32.xlu0 %v679
    %v681 = vpop.xlane.xlu0 %680
    %v682 = vsel %vm65, %v642, 0.0
    %683 = vadd.xlane.f32.xlu0 %v682
    %v684 = vpop.xlane.xlu0 %683
    %v685 = vsel %vm65, %v643, 0.0
    %686 = vadd.xlane.f32.xlu0 %v685
    %v687 = vpop.xlane.xlu0 %686
    %v688 = vsel %vm65, %v644, 0.0
    %689 = vadd.xlane.f32.xlu0 %v688
    %v690 = vpop.xlane.xlu0 %689
    %v691 = vsel %vm65, %v645, 0.0
    %692 = vadd.xlane.f32.xlu0 %v691
    %v693 = vpop.xlane.xlu0 %692
    %694 = vst.msk [vmem:[%s7] sm:$0xff] %vm291, %v648
    %695 = vst.msk [vmem:[%s7 + $0x8] sm:$0xff] %vm291, %v651
    %696 = vst.msk [vmem:[%s7 + $0x10] sm:$0xff] %vm291, %v654
    %697 = vst.msk [vmem:[%s7 + $0x18] sm:$0xff] %vm291, %v657
    %698 = vst.msk [vmem:[%s7 + $0x20] sm:$0xff] %vm291, %v660
    %699 = vst.msk [vmem:[%s7 + $0x28] sm:$0xff] %vm291, %v663
    %700 = vst.msk [vmem:[%s7 + $0x30] sm:$0xff] %vm291, %v666
    %701 = vst.msk [vmem:[%s7 + $0x38] sm:$0xff] %vm291, %v669
    %702 = vst.msk [vmem:[%s7 + $0x40] sm:$0xff] %vm291, %v672
    %703 = vst.msk [vmem:[%s7 + $0x48] sm:$0xff] %vm291, %v675
    %704 = vst.msk [vmem:[%s7 + $0x50] sm:$0xff] %vm291, %v678
    %705 = vst.msk [vmem:[%s7 + $0x58] sm:$0xff] %vm291, %v681
    %706 = vst.msk [vmem:[%s7 + $0x60] sm:$0xff] %vm291, %v684
    %707 = vst.msk [vmem:[%s7 + $0x68] sm:$0xff] %vm291, %v687
    %708 = vst.msk [vmem:[%s7 + $0x70] sm:$0xff] %vm291, %v690
    %709 = vst.msk [vmem:[%s7 + $0x78] sm:$0xff] %vm291, %v693
    // Predicated region
    $region18: #{ema_quantize_forward.1} parent=1 // pred_check
      _
    $region19: #{ema_quantize_forward.1} parent=1 // pred_check_branch
      %711 = sbr.rel (0) target = $region21
    $region20: #{ema_quantize_forward.1} parent=1 // pred_region
      %s713 = ssub.s32 2048, 2048
      %714 = vsyncadd [#allocation3], %s713
      %s715 = sshll.u32 [#allocation2], 4
      %s716 = int_to_ptr.vmem [resolvable:$true] %s715
      %721 = dma.vmem_to_hbm [thread:$0]  %s716, 2048, %s4, [#allocation3], 128, 128, 8
    $region21: #{ema_quantize_forward.1} parent=1 // pred_fallthru
      _
    // Predicated region
    $region22: #{ema_quantize_forward.1} parent=1 // pred_check
      _
    $region23: #{ema_quantize_forward.1} parent=1 // pred_check_branch
      %723 = sbr.rel (0) target = $region25
    $region24: #{ema_quantize_forward.1} parent=1 // pred_region
      _
    $region25: #{ema_quantize_forward.1} parent=1 // pred_fallthru
      _
    // Predicated region
    $region26: #{ema_quantize_forward.1} parent=1 // pred_check
      _
    $region27: #{ema_quantize_forward.1} parent=1 // pred_check_branch
      %725 = sbr.rel (0) target = $region29
    $region28: #{ema_quantize_forward.1} parent=1 // pred_region
      _
    $region29: #{ema_quantize_forward.1} parent=1 // pred_fallthru
      _
    // Predicated region
    $region30: #{ema_quantize_forward.1} parent=1 // pred_check
      _
    $region31: #{ema_quantize_forward.1} parent=1 // pred_check_branch
      %727 = sbr.rel (0) target = $region33
    $region32: #{ema_quantize_forward.1} parent=1 // pred_region
      _
    $region33: #{ema_quantize_forward.1} parent=1 // pred_fallthru
      _
    // Predicated region
    $region34: #{ema_quantize_forward.1} parent=1 // pred_check
      _
    $region35: #{ema_quantize_forward.1} parent=1 // pred_check_branch
      %729 = sbr.rel (0) target = $region37
    $region36: #{ema_quantize_forward.1} parent=1 // pred_region
      %730 = dma.done [#allocation3], 2048
    $region37: #{ema_quantize_forward.1} parent=1 // pred_fallthru
      _
    // Predicated region
    $region38: #{ema_quantize_forward.1} parent=1 // pred_check
      _
    $region39: #{ema_quantize_forward.1} parent=1 // pred_check_branch
      %732 = sbr.rel (0) target = $region41
    $region40: #{ema_quantize_forward.1} parent=1 // pred_region
      _
    $region41: #{ema_quantize_forward.1} parent=1 // pred_fallthru
      _
    // Predicated region
    $region42: #{ema_quantize_forward.1} parent=1 // pred_check
      _
    $region43: #{ema_quantize_forward.1} parent=1 // pred_check_branch
      %734 = sbr.rel (0) target = $region45
    $region44: #{ema_quantize_forward.1} parent=1 // pred_region
      _
    $region45: #{ema_quantize_forward.1} parent=1 // pred_fallthru
      _
    // Predicated region
    $region46: #{ema_quantize_forward.1} parent=1 // pred_check
      _
    $region47: #{ema_quantize_forward.1} parent=1 // pred_check_branch
      %736 = sbr.rel (0) target = $region49
    $region48: #{ema_quantize_forward.1} parent=1 // pred_region
      _
    $region49: #{ema_quantize_forward.1} parent=1 // pred_fallthru
      _
    %737 = vsyncpa [#allocation3], 1

</llo_original>
